<compile_context>
chip_gen: v7x
topology: tpu7x:2x2x1
jax: 0.10.0
libtpu: 0.0.40
codegen_flags: <defaults>
</compile_context>

<pallas_src>
import functools

import jax
import jax.numpy as jnp
from jax.experimental import pallas as pl
from jax.experimental.pallas import tpu as pltpu

LANE = 128
SUBLANES = 8
MAX_BLOCK_ROWS = 8192   # (8192,128) f32 = 4 MiB per input per pipeline buffer
CHUNK_ROWS = 1024       # in-kernel compute chunk: ~0.5 MiB f32 intermediates
NUM_CORES = 2           # leading "parallel" axis (v7x megacore); harmless on 1-TC chips
# 2 inputs x 2 pipeline buffers x 4 MiB = 16 MiB of block buffers, plus the
# accumulator slab and compute-chunk temporaries.  40 MiB fits every
# generation's physical VMEM and avoids v5e's 16 MiB default scoped limit.
VMEM_LIMIT_BYTES = 40 * 1024 * 1024


def _loss_sums_kernel(x_ref, t_ref, acc_ref, *, block_rows):
    """Streaming accumulation of the four reductions of the combined loss.

    acc_ref block is (1, 4, 8, 128); slab 0 -> sum(x*t), 1 -> sum(x),
    2 -> sum(t), 3 -> sum(bce elementwise).  Final scalar reduction happens in
    JAX glue.  Every block handled here is fully in-bounds (the wrapper
    guarantees it), so there is no masking anywhere in the hot path.
    """

    @pl.when(pl.program_id(1) == 0)
    def _init():
        acc_ref[...] = jnp.zeros_like(acc_ref)

    def _accumulate(row0, rows):
        x = x_ref[pl.ds(row0, rows), :].astype(jnp.float32)
        t = t_ref[pl.ds(row0, rows), :].astype(jnp.float32)
        xt = x * t
        # Numerically stable BCE-with-logits, elementwise.
        bce = jnp.maximum(x, 0.0) - xt + jnp.log1p(jnp.exp(-jnp.abs(x)))

        def _fold(v):
            # (rows, 128) -> (rows//8, 8, 128) is tile-aligned, so the axis-0
            # sum lowers to plain vreg adds on the VPU (no XLU lane reduce).
            return v.reshape(rows // SUBLANES, SUBLANES, LANE).sum(axis=0)

        # TODO(synk): if a v7x bundle profile shows the VALU slot binding,
        # offload these folds to the idle MXU via
        # jnp.dot(jnp.ones((8, rows), f32), v, preferred_element_type=f32).
        acc_ref[0, 0] += _fold(xt)
        acc_ref[0, 1] += _fold(x)
        acc_ref[0, 2] += _fold(t)
        acc_ref[0, 3] += _fold(bce)

    # Walk the resident (block_rows, 128) block in CHUNK_ROWS-row chunks so
    # elementwise intermediates stay small, independent of the DMA block size.
    chunk_rows = min(CHUNK_ROWS, block_rows)
    num_chunks = block_rows // chunk_rows
    rem_rows = block_rows - num_chunks * chunk_rows   # multiple of 8

    if num_chunks == 1:
        _accumulate(0, chunk_rows)
    else:
        @pl.loop(0, num_chunks)
        def _chunk(ci):
            _accumulate(pl.multiple_of(ci * chunk_rows, chunk_rows), chunk_rows)
    if rem_rows:
        _accumulate(num_chunks * chunk_rows, rem_rows)


def _pallas_partial_sums(x2, t2, cores, blocks_per_core, block_rows):
    """Runs the streaming kernel over the first cores*blocks_per_core*block_rows
    rows of x2/t2.  Returns a (cores, 4, 8, 128) f32 accumulator."""
    kernel = functools.partial(_loss_sums_kernel, block_rows=block_rows)

    def in_map(c, i):
        return (c * blocks_per_core + i, 0)

    in_spec = pl.BlockSpec((block_rows, LANE), in_map)
    out_spec = pl.BlockSpec((1, 4, SUBLANES, LANE), lambda c, i: (c, 0, 0, 0))

    return pl.pallas_call(
        kernel,
        out_shape=jax.ShapeDtypeStruct((cores, 4, SUBLANES, LANE), jnp.float32),
        grid_spec=pltpu.PrefetchScalarGridSpec(
            num_scalar_prefetch=0,
            grid=(cores, blocks_per_core),
            in_specs=[in_spec, in_spec],
            out_specs=out_spec,
        ),
        compiler_params=pltpu.CompilerParams(
            # Axis 0 shards the stream across TensorCores on multi-core chips
            # (v7x); axis 1 is the sequential reduction/accumulator axis.
            dimension_semantics=("parallel", "arbitrary"),
            vmem_limit_bytes=VMEM_LIMIT_BYTES,
        ),
    )(x2, t2)


def _elementwise_sums(x_chunk, t_chunk):
    """Plain-JAX partial sums for the (tiny) tail not covered by the kernel."""
    x_chunk = x_chunk.astype(jnp.float32)
    t_chunk = t_chunk.astype(jnp.float32)
    xt = x_chunk * t_chunk
    bce = jnp.maximum(x_chunk, 0.0) - xt + jnp.log1p(jnp.exp(-jnp.abs(x_chunk)))
    return jnp.sum(xt), jnp.sum(x_chunk), jnp.sum(t_chunk), jnp.sum(bce)


@functools.partial(jax.jit, static_argnames=("dice_weight", "bce_weight", "smooth"))
def combined_dice_bce_loss(logits, targets, dice_weight=0.5, bce_weight=0.5,
                           smooth=1e-6):
    n = logits.size                 # static under jit
    x = logits.reshape(-1)          # free reshape of a contiguous array
    t = targets.reshape(-1)         # native dtype; kernel casts on-chip

    n_rows_total = n // LANE        # rows of a (rows, 128) 2-D view
    aligned = n_rows_total * LANE

    inter = jnp.float32(0.0)
    sum_x = jnp.float32(0.0)
    sum_t = jnp.float32(0.0)
    bce_sum = jnp.float32(0.0)

    covered = 0
    if n_rows_total >= SUBLANES:
        # Biggest block that keeps every kernel block exactly (8,128)-tiled.
        block_rows = min(MAX_BLOCK_ROWS, (n_rows_total // SUBLANES) * SUBLANES)
        num_blocks = n_rows_total // block_rows
        cores = NUM_CORES if num_blocks >= NUM_CORES else 1
        blocks_per_core = num_blocks // cores
        kernel_rows = cores * blocks_per_core * block_rows
        covered = kernel_rows * LANE

        if aligned == n:
            # Common case (n % 128 == 0): free 2-D view, zero extra HBM traffic.
            x2 = x.reshape(n_rows_total, LANE)
            t2 = t.reshape(n_rows_total, LANE)
        else:
            # TODO(synk): for n % 128 != 0 this prefix slice materializes one
            # copy of the kernel-covered prefix; a manual-DMA kernel over the
            # flat 1-D array could avoid it.
            x2 = x[:covered].reshape(kernel_rows, LANE)
            t2 = t[:covered].reshape(kernel_rows, LANE)

        acc = _pallas_partial_sums(x2, t2, cores, blocks_per_core, block_rows)
        inter = jnp.sum(acc[:, 0])
        sum_x = jnp.sum(acc[:, 1])
        sum_t = jnp.sum(acc[:, 2])
        bce_sum = jnp.sum(acc[:, 3])

    if covered < n:
        # Tail not covered by the kernel (< ~2 blocks + a <128-element sliver):
        # a tiny fused XLA reduction — no padding, no masking.
        ti, tx, tt, tb = _elementwise_sums(x[covered:], t[covered:])
        inter = inter + ti
        sum_x = sum_x + tx
        sum_t = sum_t + tt
        bce_sum = bce_sum + tb

    dice = (2.0 * inter + smooth) / (sum_x + sum_t + smooth)
    dice_loss = 1.0 - dice
    bce_loss = bce_sum / n
    return (dice_weight * dice_loss + bce_weight * bce_loss).astype(jnp.float32)


def _reference(logits, targets, dice_weight=0.5, bce_weight=0.5, smooth=1e-6):
    # NOTE: matches the PyTorch module: dice on raw logits (no sigmoid).
    x = logits.reshape(-1).astype(jnp.float32)
    t = targets.reshape(-1).astype(jnp.float32)
    inter = jnp.sum(x * t)
    dice = (2.0 * inter + smooth) / (jnp.sum(x) + jnp.sum(t) + smooth)
    bce = jnp.mean(jnp.maximum(x, 0.0) - x * t + jnp.log1p(jnp.exp(-jnp.abs(x))))
    return dice_weight * (1.0 - dice) + bce_weight * bce


if __name__ == "__main__":
    key = jax.random.PRNGKey(0)
    k1, k2, k3, k4, k5, k6 = jax.random.split(key, 6)

    # Small NCHW, 128-aligned: free-reshape, single-block path.
    logits = jax.random.normal(k1, (2, 4, 16, 16), dtype=jnp.float32)
    targets = jax.random.bernoulli(k2, 0.5, (2, 4, 16, 16)).astype(jnp.float32)
    loss = jax.block_until_ready(combined_dice_bce_loss(logits, targets))
    ref = _reference(logits, targets)
    assert jnp.allclose(loss, ref, atol=1e-5, rtol=1e-5), (loss, ref)

    # Shape NOT a multiple of 128: exercises the glue-tail path (no pad, no mask).
    logits2 = jax.random.normal(k3, (3, 5, 17, 13), dtype=jnp.float32)
    targets2 = jax.random.bernoulli(k4, 0.5, (3, 5, 17, 13)).astype(jnp.float32)
    loss2 = jax.block_until_ready(combined_dice_bce_loss(logits2, targets2))
    ref2 = _reference(logits2, targets2)
    assert jnp.allclose(loss2, ref2, atol=1e-5, rtol=1e-5), (loss2, ref2)

    # Larger input: exercises 8192-row blocks, the in-kernel chunk loop, and
    # the 2-way "parallel" core axis (grid (2, 1)).
    logits3 = jax.random.normal(k5, (2, 4, 512, 512), dtype=jnp.float32)
    targets3 = jax.random.bernoulli(k6, 0.5, (2, 4, 512, 512)).astype(jnp.float32)
    loss3 = jax.block_until_ready(combined_dice_bce_loss(logits3, targets3))
    ref3 = _reference(logits3, targets3)
    assert jnp.allclose(loss3, ref3, atol=1e-4, rtol=1e-4), (loss3, ref3)

    print("KERNEL_OK")
</pallas_src>

<mosaic_0001>
module attributes {stable_mosaic.version = 11 : i64} {
  func.func @_loss_sums_kernel(%arg0: i32, %arg1: i32, %arg2: memref<16x128xf32, #tpu.memory_space<vmem>>, %arg3: memref<16x128xf32, #tpu.memory_space<vmem>>, %arg4: memref<1x4x8x128xf32, #tpu.memory_space<vmem>>) attributes {dimension_semantics = [#tpu.dimension_semantics<parallel>, #tpu.dimension_semantics<arbitrary>], iteration_bounds = array<i64: 1, 1>, scalar_prefetch = 0 : i64, scratch_operands = 0 : i64, tpu.core_type = #tpu.core_type<tc>, window_params = [{transform_indices = @transform_0, window_bounds = array<i64: 16, 128>}, {transform_indices = @transform_1, window_bounds = array<i64: 16, 128>}, {transform_indices = @transform_2, window_bounds = array<i64: 1, 4, 8, 128>}]} {
    %c0_i32 = arith.constant 0 : i32
    %0 = arith.cmpi eq, %arg1, %c0_i32 : i32
    %1 = arith.extui %0 : i1 to i32
    %c0_i32_0 = arith.constant 0 : i32
    %2 = arith.cmpi ne, %1, %c0_i32_0 : i32
    scf.if %2 {
      %cst_38 = arith.constant 0.000000e+00 : f32
      %47 = vector.broadcast %cst_38 : f32 to vector<1x4x8x128xf32>
      %c0_39 = arith.constant 0 : index
      %c0_40 = arith.constant 0 : index
      %c0_41 = arith.constant 0 : index
      %c0_42 = arith.constant 0 : index
      %48 = vector.load %arg4[%c0_39, %c0_40, %c0_41, %c0_42] : memref<1x4x8x128xf32, #tpu.memory_space<vmem>>, vector<1x4x8x128xf32>
      tpu.vector_store %arg4[%c0_39, %c0_40, %c0_41, %c0_42], %47 {strides = array<i32>} : memref<1x4x8x128xf32, #tpu.memory_space<vmem>>, vector<1x4x8x128xf32>,
    } else {
    }
    %c0 = arith.constant 0 : index
    %c0_1 = arith.constant 0 : index
    %3 = vector.load %arg2[%c0, %c0_1] : memref<16x128xf32, #tpu.memory_space<vmem>>, vector<16x128xf32>
    %c0_2 = arith.constant 0 : index
    %c0_3 = arith.constant 0 : index
    %4 = vector.load %arg3[%c0_2, %c0_3] : memref<16x128xf32, #tpu.memory_space<vmem>>, vector<16x128xf32>
    %5 = arith.mulf %3, %4 : vector<16x128xf32>
    %cst = arith.constant 0.000000e+00 : f32
    %6 = vector.broadcast %cst : f32 to vector<16x128xf32>
    %7 = arith.maximumf %3, %6 : vector<16x128xf32>
    %8 = arith.subf %7, %5 : vector<16x128xf32>
    %9 = math.absf %3 : vector<16x128xf32>
    %cst_4 = arith.constant 0.000000e+00 : f32
    %10 = vector.broadcast %cst_4 : f32 to vector<16x128xf32>
    %11 = arith.subf %10, %9 : vector<16x128xf32>
    %12 = math.exp %11 : vector<16x128xf32>
    %13 = math.log1p %12 : vector<16x128xf32>
    %14 = arith.addf %8, %13 : vector<16x128xf32>
    %c0_5 = arith.constant 0 : index
    %c0_6 = arith.constant 0 : index
    %c0_7 = arith.constant 0 : index
    %c0_8 = arith.constant 0 : index
    %15 = vector.load %arg4[%c0_5, %c0_6, %c0_7, %c0_8] : memref<1x4x8x128xf32, #tpu.memory_space<vmem>>, vector<1x1x8x128xf32>
    %16 = vector.shape_cast %15 : vector<1x1x8x128xf32> to vector<8x128xf32>
    %17 = vector.shape_cast %5 : vector<16x128xf32> to vector<2x8x128xf32>
    %cst_9 = arith.constant dense<0.000000e+00> : vector<8x128xf32>
    %18 = vector.multi_reduction <add>, %17, %cst_9 [0] : vector<2x8x128xf32> to vector<8x128xf32>
    %19 = arith.addf %16, %18 : vector<8x128xf32>
    %c0_10 = arith.constant 0 : index
    %c0_11 = arith.constant 0 : index
    %c0_12 = arith.constant 0 : index
    %c0_13 = arith.constant 0 : index
    %20 = vector.load %arg4[%c0_10, %c0_11, %c0_12, %c0_13] : memref<1x4x8x128xf32, #tpu.memory_space<vmem>>, vector<1x1x8x128xf32>
    %21 = vector.shape_cast %20 : vector<1x1x8x128xf32> to vector<8x128xf32>
    %22 = vector.shape_cast %19 : vector<8x128xf32> to vector<1x1x8x128xf32>
    tpu.vector_store %arg4[%c0_10, %c0_11, %c0_12, %c0_13], %22 {strides = array<i32>} : memref<1x4x8x128xf32, #tpu.memory_space<vmem>>, vector<1x1x8x128xf32>,
    %c0_14 = arith.constant 0 : index
    %c1 = arith.constant 1 : index
    %c0_15 = arith.constant 0 : index
    %c0_16 = arith.constant 0 : index
    %23 = vector.load %arg4[%c0_14, %c1, %c0_15, %c0_16] : memref<1x4x8x128xf32, #tpu.memory_space<vmem>>, vector<1x1x8x128xf32>
    %24 = vector.shape_cast %23 : vector<1x1x8x128xf32> to vector<8x128xf32>
    %25 = vector.shape_cast %3 : vector<16x128xf32> to vector<2x8x128xf32>
    %cst_17 = arith.constant dense<0.000000e+00> : vector<8x128xf32>
    %26 = vector.multi_reduction <add>, %25, %cst_17 [0] : vector<2x8x128xf32> to vector<8x128xf32>
    %27 = arith.addf %24, %26 : vector<8x128xf32>
    %c0_18 = arith.constant 0 : index
    %c1_19 = arith.constant 1 : index
    %c0_20 = arith.constant 0 : index
    %c0_21 = arith.constant 0 : index
    %28 = vector.load %arg4[%c0_18, %c1_19, %c0_20, %c0_21] : memref<1x4x8x128xf32, #tpu.memory_space<vmem>>, vector<1x1x8x128xf32>
    %29 = vector.shape_cast %28 : vector<1x1x8x128xf32> to vector<8x128xf32>
    %30 = vector.shape_cast %27 : vector<8x128xf32> to vector<1x1x8x128xf32>
    tpu.vector_store %arg4[%c0_18, %c1_19, %c0_20, %c0_21], %30 {strides = array<i32>} : memref<1x4x8x128xf32, #tpu.memory_space<vmem>>, vector<1x1x8x128xf32>,
    %c0_22 = arith.constant 0 : index
    %c2 = arith.constant 2 : index
    %c0_23 = arith.constant 0 : index
    %c0_24 = arith.constant 0 : index
    %31 = vector.load %arg4[%c0_22, %c2, %c0_23, %c0_24] : memref<1x4x8x128xf32, #tpu.memory_space<vmem>>, vector<1x1x8x128xf32>
    %32 = vector.shape_cast %31 : vector<1x1x8x128xf32> to vector<8x128xf32>
    %33 = vector.shape_cast %4 : vector<16x128xf32> to vector<2x8x128xf32>
    %cst_25 = arith.constant dense<0.000000e+00> : vector<8x128xf32>
    %34 = vector.multi_reduction <add>, %33, %cst_25 [0] : vector<2x8x128xf32> to vector<8x128xf32>
    %35 = arith.addf %32, %34 : vector<8x128xf32>
    %c0_26 = arith.constant 0 : index
    %c2_27 = arith.constant 2 : index
    %c0_28 = arith.constant 0 : index
    %c0_29 = arith.constant 0 : index
    %36 = vector.load %arg4[%c0_26, %c2_27, %c0_28, %c0_29] : memref<1x4x8x128xf32, #tpu.memory_space<vmem>>, vector<1x1x8x128xf32>
    %37 = vector.shape_cast %36 : vector<1x1x8x128xf32> to vector<8x128xf32>
    %38 = vector.shape_cast %35 : vector<8x128xf32> to vector<1x1x8x128xf32>
    tpu.vector_store %arg4[%c0_26, %c2_27, %c0_28, %c0_29], %38 {strides = array<i32>} : memref<1x4x8x128xf32, #tpu.memory_space<vmem>>, vector<1x1x8x128xf32>,
    %c0_30 = arith.constant 0 : index
    %c3 = arith.constant 3 : index
    %c0_31 = arith.constant 0 : index
    %c0_32 = arith.constant 0 : index
    %39 = vector.load %arg4[%c0_30, %c3, %c0_31, %c0_32] : memref<1x4x8x128xf32, #tpu.memory_space<vmem>>, vector<1x1x8x128xf32>
    %40 = vector.shape_cast %39 : vector<1x1x8x128xf32> to vector<8x128xf32>
    %41 = vector.shape_cast %14 : vector<16x128xf32> to vector<2x8x128xf32>
    %cst_33 = arith.constant dense<0.000000e+00> : vector<8x128xf32>
    %42 = vector.multi_reduction <add>, %41, %cst_33 [0] : vector<2x8x128xf32> to vector<8x128xf32>
    %43 = arith.addf %40, %42 : vector<8x128xf32>
    %c0_34 = arith.constant 0 : index
    %c3_35 = arith.constant 3 : index
    %c0_36 = arith.constant 0 : index
    %c0_37 = arith.constant 0 : index
    %44 = vector.load %arg4[%c0_34, %c3_35, %c0_36, %c0_37] : memref<1x4x8x128xf32, #tpu.memory_space<vmem>>, vector<1x1x8x128xf32>
    %45 = vector.shape_cast %44 : vector<1x1x8x128xf32> to vector<8x128xf32>
    %46 = vector.shape_cast %43 : vector<8x128xf32> to vector<1x1x8x128xf32>
    tpu.vector_store %arg4[%c0_34, %c3_35, %c0_36, %c0_37], %46 {strides = array<i32>} : memref<1x4x8x128xf32, #tpu.memory_space<vmem>>, vector<1x1x8x128xf32>,
    return
  }
  func.func @transform_0(%arg0: i32, %arg1: i32) -> (i32, i32) {
    %c1_i32 = arith.constant 1 : i32
    %0 = arith.muli %arg0, %c1_i32 : i32
    %1 = arith.addi %0, %arg1 : i32
    %c0_i32 = arith.constant 0 : i32
    %c0_i32_0 = arith.constant 0 : i32
    return %1, %c0_i32 : i32, i32
  }
  func.func @transform_1(%arg0: i32, %arg1: i32) -> (i32, i32) {
    %c1_i32 = arith.constant 1 : i32
    %0 = arith.muli %arg0, %c1_i32 : i32
    %1 = arith.addi %0, %arg1 : i32
    %c0_i32 = arith.constant 0 : i32
    %c0_i32_0 = arith.constant 0 : i32
    return %1, %c0_i32 : i32, i32
  }
  func.func @transform_2(%arg0: i32, %arg1: i32) -> (i32, i32, i32, i32) {
    %c0_i32 = arith.constant 0 : i32
    %c0_i32_0 = arith.constant 0 : i32
    %c0_i32_1 = arith.constant 0 : i32
    %c0_i32_2 = arith.constant 0 : i32
    return %arg0, %c0_i32, %c0_i32_0, %c0_i32_1 : i32, i32, i32, i32
  }
}

</mosaic_0001>

<llo_original>
// kernel: combined_dice_bce_loss.1
$region0: #{combined_dice_bce_loss.1}
  #allocation0 [shape = 'u32[]', space=smem, size = 0x4, offset = 0x4, fixed_abs, tag = 'smem constant byte address 0x4 - core index']
  #allocation1 [shape = 'u32[144,128]{1,0:T(1,128)}', space=vmem, size = 0x12000, scoped, tag = 'internal scratch']
  %s0 = inlined_call_operand.vmem [shape: f32[16,128], index: 0, kind: input, shape index: {}]
  %s1 = inlined_call_operand.vmem [shape: f32[16,128], index: 1, kind: input, shape index: {}]
  %s2 = inlined_call_operand.vmem [shape: f32[1,4,8,128], index: 2, kind: output, shape index: {}]
  %s3 = sld [smem:[#allocation0]]
  $region22: #{combined_dice_bce_loss.1} parent=0
    _
  %s5 = ssub.s32 1, %s3
  %s6 = scalar_select 0, %s5, %s3
  // Predicated region
  $region2: #{combined_dice_bce_loss.1} parent=0 // pred_check
    _
  $region3: #{combined_dice_bce_loss.1} parent=0 // pred_check_branch
    %8 = sbr.rel (0) target = $region5
  $region4: #{combined_dice_bce_loss.1} parent=0 // pred_region
    %s9 = sadd.s32 0, 0
    %s10 = smul.u32 2, %s9
    %p11 = scmp.lt.s32.totalorder %s10, 1
    %s12 = scalar_select %p11, %s10, 1
    %s13 = smul.addr %s12, 8
    %s14 = scalar_lea.vmem %s0, %s13
    %s15 = sadd.s32 0, 0
    %s16 = smul.u32 2, %s15
  $region5: #{combined_dice_bce_loss.1} parent=0 // pred_fallthru
    _
  // Predicated region
  $region6: #{combined_dice_bce_loss.1} parent=0 // pred_check
    _
  $region7: #{combined_dice_bce_loss.1} parent=0 // pred_check_branch
    %18 = sbr.rel (0) target = $region9
  $region8: #{combined_dice_bce_loss.1} parent=0 // pred_region
    %s19 = sadd.s32 0, 0
    %s20 = smul.u32 2, %s19
    %p21 = scmp.lt.s32.totalorder %s20, 1
    %s22 = scalar_select %p21, %s20, 1
    %s23 = smul.addr %s22, 8
    %s24 = scalar_lea.vmem %s1, %s23
    %s25 = sadd.s32 0, 0
    %s26 = smul.u32 2, %s25
  $region9: #{combined_dice_bce_loss.1} parent=0 // pred_fallthru
    _
  %s27 = sadd.s32 0, 0
  %s28 = smul.u32 2, %s27
  %p29 = scmp.lt.s32.totalorder %s28, 1
  %s30 = scalar_select %p29, %s28, 1
  %s31 = smul.addr %s30, 8
  %s32 = scalar_lea.vmem %s0, %s31
  %s33 = sadd.s32 0, 0
  %s34 = smul.u32 2, %s33
  %p35 = scmp.lt.s32.totalorder %s34, 1
  %s36 = scalar_select %p35, %s34, 1
  %s37 = smul.addr %s36, 8
  %s38 = scalar_lea.vmem %s1, %s37
  %s39 = sadd.s32 0, 0
  %s40 = smul.u32 2, %s39
  %p41 = scmp.lt.s32.totalorder %s40, 1
  %s42 = scalar_select %p41, %s40, 1
  %s43 = smul.addr %s42, 8
  %s44 = scalar_lea.vmem %s0, %s43
  %s45 = sadd.s32 0, 0
  %s46 = smul.u32 2, %s45
  %s47 = sadd.s32 0, 0
  %s48 = smul.u32 2, %s47
  %p49 = scmp.lt.s32.totalorder %s48, 1
  %s50 = scalar_select %p49, %s48, 1
  %s51 = smul.addr %s50, 8
  %s52 = scalar_lea.vmem %s1, %s51
  %s53 = sadd.s32 0, 0
  %s54 = smul.u32 2, %s53
  %p55 = scmp.eq.s32.totalorder 0, 0
  // Predicated region
  $region10: #{combined_dice_bce_loss.1} parent=0 // pred_check
    %p56 = pneg %p55
  $region11: #{combined_dice_bce_loss.1} parent=0 // pred_check_branch
    %58 = sbr.rel (%p56) target = $region13
  $region12: #{combined_dice_bce_loss.1} parent=0 // pred_region
    %59 = vst [vmem:[%s2] sm:$0xff] 0.0
    %60 = vst [vmem:[%s2 + $0x8] sm:$0xff] 0.0
    %61 = vst [vmem:[%s2 + $0x10] sm:$0xff] 0.0
    %62 = vst [vmem:[%s2 + $0x18] sm:$0xff] 0.0
  $region13: #{combined_dice_bce_loss.1} parent=0 // pred_fallthru
    _
  %v63 = vld [vmem:[%s44] sm:$0xff]
  %v64 = vld [vmem:[%s44 + $0x8] sm:$0xff]
  %v65 = vld [vmem:[%s52] sm:$0xff]
  %v66 = vld [vmem:[%s52 + $0x8] sm:$0xff]
  %v67 = vmul.f32 %v63, %v65
  %v68 = vmul.f32 %v64, %v66
  %v69 = vmax.f32 %v63, 0.0
  %v70 = vmax.f32 %v64, 0.0
  %v71 = vsub.f32 %v69, %v67
  %v72 = vsub.f32 %v70, %v68
  %v73 = vand.u32 2147483647, %v63
  %v74 = vand.u32 2147483647, %v64
  %v75 = vsub.f32 0.0, %v73
  %v76 = vsub.f32 0.0, %v74
  %v77 = vmul.f32 %v75, 1.442695
  %v78 = vpow.pop %v77
  %v79 = vmul.f32 %v76, 1.442695
  %v80 = vpow.pop %v79
  %v81 = vadd.f32 %v78, 1.0
  %v82 = vlog2.pop %v81
  %v83 = vmul.f32 %v82, 0.6931472
  %v84 = vmul.f32 -0.5, %v78
  %v85 = vadd.f32 %v84, 1.0
  %v86 = vmul.f32 %v85, %v78
  %v87 = vand.u32 2147483647, %v78
  %vm88 = vcmp.lt.f32.partialorder %v87, 0.0004427343
  %v89 = vsel %vm88, %v86, %v83
  %v90 = vadd.f32 %v80, 1.0
  %v91 = vlog2.pop %v90
  %v92 = vmul.f32 %v91, 0.6931472
  %v93 = vmul.f32 -0.5, %v80
  %v94 = vadd.f32 %v93, 1.0
  %v95 = vmul.f32 %v94, %v80
  %v96 = vand.u32 2147483647, %v80
  %vm97 = vcmp.lt.f32.partialorder %v96, 0.0004427343
  %v98 = vsel %vm97, %v95, %v92
  %v99 = vadd.f32 %v71, %v89
  %v100 = vadd.f32 %v72, %v98
  %v101 = vld [vmem:[%s2] sm:$0xff]
  %v102 = vadd.f32 %v67, %v68
  %v103 = vadd.f32 %v101, %v102
  %104 = vst [vmem:[%s2] sm:$0xff] %v103
  %s105 = scalar_lea.vmem %s2, 8
  %v106 = vld [vmem:[%s105] sm:$0xff]
  %v107 = vadd.f32 %v63, %v64
  %v108 = vadd.f32 %v106, %v107
  %109 = vst [vmem:[%s105] sm:$0xff] %v108
  %s110 = scalar_lea.vmem %s2, 16
  %v111 = vld [vmem:[%s110] sm:$0xff]
  %v112 = vadd.f32 %v65, %v66
  %v113 = vadd.f32 %v111, %v112
  %114 = vst [vmem:[%s110] sm:$0xff] %v113
  %s115 = scalar_lea.vmem %s2, 24
  %v116 = vld [vmem:[%s115] sm:$0xff]
  %v117 = vadd.f32 %v99, %v100
  %v118 = vadd.f32 %v116, %v117
  %119 = vst [vmem:[%s115] sm:$0xff] %v118
  // Predicated region
  $region14: #{combined_dice_bce_loss.1} parent=0 // pred_check
    _
  $region15: #{combined_dice_bce_loss.1} parent=0 // pred_check_branch
    %121 = sbr.rel (0) target = $region17
  $region16: #{combined_dice_bce_loss.1} parent=0 // pred_region
    _
  $region17: #{combined_dice_bce_loss.1} parent=0 // pred_fallthru
    _
  // Predicated region
  $region18: #{combined_dice_bce_loss.1} parent=0 // pred_check
    _
  $region19: #{combined_dice_bce_loss.1} parent=0 // pred_check_branch
    %123 = sbr.rel (0) target = $region21
  $region20: #{combined_dice_bce_loss.1} parent=0 // pred_region
    _
  $region21: #{combined_dice_bce_loss.1} parent=0 // pred_fallthru
    _

</llo_original>
